<compile_context>
chip_gen: v5e
topology: v5e:2x2
jax: 0.10.0
libtpu: 0.0.40
codegen_flags: <defaults>
</compile_context>

<pallas_src>
import jax
import jax.numpy as jnp
import numpy as np
from jax.experimental import pallas as pl
from jax.experimental.pallas import tpu as pltpu

LAYERS = [2, 20, 20, 20, 20, 20, 1]

_IN_ROWS = 8       # padded input rows: [x, t, 1, 0, 0, 0, 0, 0]
_IN_ONE = 2        # index of the constant-ones row in the padded input
_HID_ROWS = 24     # padded hidden rows (multiple of 8 sublanes, >= 21)
_ONE_ROW = 20      # index of the constant-ones row in hidden activations
_SAT = 30.0        # tanh(_SAT) == 1.0 in float32 -> ones row survives tanh


# --------------------------------------------------------------------------
# Kernel
# --------------------------------------------------------------------------
def _mlp_kernel(x_ref, w0_ref, slab_ref, out_ref):
    """Forward pass for one batch tile, batch on the lane axis.

    x_ref:    (8, tile_n)       padded inputs [x, t, 1, 0...] x batch
    w0_ref:   (24, 8)           layer-0 weights (bias folded, ones-row regen)
    slab_ref: (5, 24, 24)       layers 1..5 weights (bias folded)
    out_ref:  (1, tile_n)       network output (lane-dense)
    """
    mxu_dtype = w0_ref.dtype
    x = x_ref[...].astype(mxu_dtype)

    # Layer 0 + tanh (bias folded through the ones row at input row _IN_ONE).
    h = jnp.tanh(jnp.dot(w0_ref[...], x, preferred_element_type=jnp.float32))

    n_slab = slab_ref.shape[0]
    for i in range(n_slab):                      # layers 1..5, fully unrolled
        z = jnp.dot(slab_ref[i], h.astype(mxu_dtype),
                    preferred_element_type=jnp.float32)
        h = jnp.tanh(z) if i < n_slab - 1 else z  # last layer is linear

    out_ref[...] = h[:1, :].astype(out_ref.dtype)


# --------------------------------------------------------------------------
# Host-side packing / input preparation
# --------------------------------------------------------------------------
def pack_params(params, mxu_dtype=jnp.bfloat16):
    """Pack [(W (f_in,f_out), b (1,f_out)), ...] into (w0 (24,8), slab (5,24,24)).

    Each block stores W^T in [:f_out, :f_in] and the bias in the column that
    multiplies the constant-ones activation row.  Hidden layers additionally
    store _SAT at [_ONE_ROW, ones-col] so that the ones row is regenerated
    through tanh (tanh(_SAT) == 1.0 in float32)."""
    assert len(params) == len(LAYERS) - 1

    w0, b0 = params[0]
    w0 = np.asarray(w0, np.float32)
    b0 = np.asarray(b0, np.float32).reshape(-1)
    f_in0, f_out0 = w0.shape
    assert f_in0 <= _IN_ONE and f_out0 <= _ONE_ROW

    w0_slab = np.zeros((_HID_ROWS, _IN_ROWS), np.float32)
    w0_slab[:f_out0, :f_in0] = w0.T
    w0_slab[:f_out0, _IN_ONE] = b0
    w0_slab[_ONE_ROW, _IN_ONE] = _SAT            # layer 0 is followed by tanh

    slab = np.zeros((len(params) - 1, _HID_ROWS, _HID_ROWS), np.float32)
    for i, (w, b) in enumerate(params[1:]):
        w = np.asarray(w, np.float32)
        b = np.asarray(b, np.float32).reshape(-1)
        f_in, f_out = w.shape
        assert f_in <= _ONE_ROW and f_out <= _ONE_ROW
        slab[i, :f_out, :f_in] = w.T
        slab[i, :f_out, _ONE_ROW] = b
        if i < len(params) - 2:                  # hidden layers keep ones row
            slab[i, _ONE_ROW, _ONE_ROW] = _SAT

    return jnp.asarray(w0_slab, mxu_dtype), jnp.asarray(slab, mxu_dtype)


def prepare_inputs(x, n_pad):
    """(N, 2) -> (8, n_pad) f32 slab [x; t; 1; 0...], zero-padded columns.

    In a PINN training loop call this once (outside the step) and reuse the
    result, so the per-call path has no extra transpose/pad HBM pass."""
    n = x.shape[0]
    xt = jnp.concatenate(
        [jnp.transpose(x).astype(jnp.float32),
         jnp.ones((1, n), jnp.float32),
         jnp.zeros((_IN_ROWS - LAYERS[0] - 1, n), jnp.float32)], axis=0)
    if n_pad != n:
        xt = jnp.pad(xt, ((0, 0), (0, n_pad - n)))
    return xt


def _round_up(a, b):
    return (a + b - 1) // b * b


def _cdiv(a, b):
    return -(-a // b)


def _choose_tile(n, tile_n):
    """Pick a lane-aligned batch tile and padded batch size.

    Prefers an even number of >= 2 grid steps (v7x has two TensorCores sharing
    the 'parallel' grid axis); harmless on single-core chips."""
    n128 = _round_up(max(n, 1), 128)
    tile_n = max(128, min(_round_up(tile_n, 128), n128))
    steps = _cdiv(n, tile_n)
    if steps == 1 and n128 >= 256:
        steps = 2
    elif steps > 1 and steps % 2:
        steps += 1
    tile_n = max(128, _round_up(_cdiv(n, steps), 128))
    return tile_n, steps * tile_n


# --------------------------------------------------------------------------
# pallas_call wrapper
# --------------------------------------------------------------------------
def dnn_apply(xt, w0_slab, slab, *, tile_n):
    """xt: (8, n_pad) from prepare_inputs.  Returns (1, n_pad) f32."""
    in_rows, n_pad = xt.shape
    assert n_pad % tile_n == 0
    grid = (n_pad // tile_n,)

    return pl.pallas_call(
        _mlp_kernel,
        out_shape=jax.ShapeDtypeStruct((1, n_pad), jnp.float32),
        grid_spec=pltpu.PrefetchScalarGridSpec(
            num_scalar_prefetch=0,
            grid=grid,
            in_specs=[
                pl.BlockSpec((in_rows, tile_n), lambda i: (0, i)),
                # Parameter slabs: constant index_map -> the pipeline only
                # issues a copy when the block index changes, so these are
                # DMA'd once and stay resident in VMEM for the whole grid.
                pl.BlockSpec(w0_slab.shape, lambda i: (0, 0)),
                pl.BlockSpec(slab.shape, lambda i: (0, 0, 0)),
            ],
            out_specs=pl.BlockSpec((1, tile_n), lambda i: (0, i)),
        ),
        compiler_params=pltpu.CompilerParams(
            dimension_semantics=("parallel",)),
    )(xt, w0_slab, slab)


def dnn_forward(x, params, *, tile_n=8192, mxu_dtype=jnp.bfloat16):
    """x: (N, 2) float32; params: list of (W (f_in, f_out), b (1, f_out)).

    Returns (N, 1) float32, matching the PyTorch DNN forward (exactly, up to
    MXU rounding, for mxu_dtype=jnp.float32; bf16 operands keep f32 accum)."""
    n, f_in = x.shape
    assert f_in == LAYERS[0]

    w0_slab, slab = pack_params(params, mxu_dtype)
    tile_n, n_pad = _choose_tile(n, tile_n)
    xt = prepare_inputs(x, n_pad)
    out = dnn_apply(xt, w0_slab, slab, tile_n=tile_n)
    return jnp.transpose(out[:, :n])                       # (N, 1)


# --------------------------------------------------------------------------
# Init + reference
# --------------------------------------------------------------------------
def init_params(key, layers=LAYERS):
    """Deterministic init mimicking torch.nn.Linear defaults:
    U(-1/sqrt(fan_in), 1/sqrt(fan_in)) for both W and b."""
    params = []
    for i in range(len(layers) - 1):
        f_in, f_out = layers[i], layers[i + 1]
        key, kw, kb = jax.random.split(key, 3)
        bound = 1.0 / jnp.sqrt(jnp.float32(f_in))
        w = jax.random.uniform(kw, (f_in, f_out), jnp.float32, -bound, bound)
        b = jax.random.uniform(kb, (1, f_out), jnp.float32, -bound, bound)
        params.append((w, b))
    return params


def dnn_reference(x, params):
    """Host-side float64 reference (precision-independent of TPU matmul)."""
    h = np.asarray(x, np.float64)
    for i, (w, b) in enumerate(params):
        h = h @ np.asarray(w, np.float64) + np.asarray(b, np.float64)
        if i < len(params) - 1:
            h = np.tanh(h)
    return h


if __name__ == "__main__":
    key = jax.random.PRNGKey(0)
    key, kx = jax.random.split(key)

    N = 64                      # small batch of (x, t) collocation points
    x = jax.random.uniform(kx, (N, LAYERS[0]), jnp.float32, -1.0, 1.0)
    params = init_params(jax.random.PRNGKey(0))
    ref = dnn_reference(np.asarray(x), params)

    # Exact-semantics mode: f32 MXU operands.
    out_f32 = jax.block_until_ready(dnn_forward(x, params, mxu_dtype=jnp.float32))
    assert out_f32.shape == (N, LAYERS[-1])
    err_f32 = float(np.max(np.abs(np.asarray(out_f32, np.float64) - ref)))
    assert err_f32 < 1e-4, f"f32 max abs err = {err_f32}"

    # Fast mode (default): bf16 MXU operands, f32 accumulation.
    out_bf16 = jax.block_until_ready(dnn_forward(x, params))
    assert out_bf16.shape == (N, LAYERS[-1])
    err_bf16 = float(np.max(np.abs(np.asarray(out_bf16, np.float64) - ref)))
    assert err_bf16 < 5e-2, f"bf16 max abs err = {err_bf16}"

    print("KERNEL_OK")
</pallas_src>

<mosaic_0001>
module attributes {stable_mosaic.version = 11 : i64} {
  func.func @_mlp_kernel(%arg0: i32, %arg1: memref<8x128xf32, #tpu.memory_space<vmem>>, %arg2: memref<24x8xf32, #tpu.memory_space<vmem>>, %arg3: memref<5x24x24xf32, #tpu.memory_space<vmem>>, %arg4: memref<1x128xf32, #tpu.memory_space<vmem>>) attributes {dimension_semantics = [#tpu.dimension_semantics<parallel>], iteration_bounds = array<i64: 1>, scalar_prefetch = 0 : i64, scratch_operands = 0 : i64, tpu.core_type = #tpu.core_type<tc>, window_params = [{transform_indices = @transform_0, window_bounds = array<i64: 8, 128>}, {pipeline_mode = #tpu.pipeline_mode<synchronous>, transform_indices = @transform_1, window_bounds = array<i64: 24, 8>}, {pipeline_mode = #tpu.pipeline_mode<synchronous>, transform_indices = @transform_2, window_bounds = array<i64: 5, 24, 24>}, {transform_indices = @transform_3, window_bounds = array<i64: 1, 128>}]} {
    %c0 = arith.constant 0 : index
    %c0_0 = arith.constant 0 : index
    %0 = vector.load %arg1[%c0, %c0_0] : memref<8x128xf32, #tpu.memory_space<vmem>>, vector<8x128xf32>
    %c0_1 = arith.constant 0 : index
    %c0_2 = arith.constant 0 : index
    %1 = vector.load %arg2[%c0_1, %c0_2] : memref<24x8xf32, #tpu.memory_space<vmem>>, vector<24x8xf32>
    %cst = arith.constant dense<0.000000e+00> : vector<24x128xf32>
    %2 = tpu.matmul %1, %0, %cst {dimension_numbers = #tpu.dot_dimension_numbers<[1], [0], [0], [1], [0, 0, 1, 1], [], []>} : vector<24x8xf32>, vector<8x128xf32>, vector<24x128xf32> -> vector<24x128xf32>
    %3 = math.tanh %2 : vector<24x128xf32>
    %c0_3 = arith.constant 0 : index
    %c0_4 = arith.constant 0 : index
    %c0_5 = arith.constant 0 : index
    %4 = vector.load %arg3[%c0_3, %c0_4, %c0_5] : memref<5x24x24xf32, #tpu.memory_space<vmem>>, vector<1x24x24xf32>
    %5 = vector.shape_cast %4 : vector<1x24x24xf32> to vector<24x24xf32>
    %cst_6 = arith.constant dense<0.000000e+00> : vector<24x128xf32>
    %6 = tpu.matmul %5, %3, %cst_6 {dimension_numbers = #tpu.dot_dimension_numbers<[1], [0], [0], [1], [0, 0, 1, 1], [], []>} : vector<24x24xf32>, vector<24x128xf32>, vector<24x128xf32> -> vector<24x128xf32>
    %7 = math.tanh %6 : vector<24x128xf32>
    %c1 = arith.constant 1 : index
    %c0_7 = arith.constant 0 : index
    %c0_8 = arith.constant 0 : index
    %8 = vector.load %arg3[%c1, %c0_7, %c0_8] : memref<5x24x24xf32, #tpu.memory_space<vmem>>, vector<1x24x24xf32>
    %9 = vector.shape_cast %8 : vector<1x24x24xf32> to vector<24x24xf32>
    %cst_9 = arith.constant dense<0.000000e+00> : vector<24x128xf32>
    %10 = tpu.matmul %9, %7, %cst_9 {dimension_numbers = #tpu.dot_dimension_numbers<[1], [0], [0], [1], [0, 0, 1, 1], [], []>} : vector<24x24xf32>, vector<24x128xf32>, vector<24x128xf32> -> vector<24x128xf32>
    %11 = math.tanh %10 : vector<24x128xf32>
    %c2 = arith.constant 2 : index
    %c0_10 = arith.constant 0 : index
    %c0_11 = arith.constant 0 : index
    %12 = vector.load %arg3[%c2, %c0_10, %c0_11] : memref<5x24x24xf32, #tpu.memory_space<vmem>>, vector<1x24x24xf32>
    %13 = vector.shape_cast %12 : vector<1x24x24xf32> to vector<24x24xf32>
    %cst_12 = arith.constant dense<0.000000e+00> : vector<24x128xf32>
    %14 = tpu.matmul %13, %11, %cst_12 {dimension_numbers = #tpu.dot_dimension_numbers<[1], [0], [0], [1], [0, 0, 1, 1], [], []>} : vector<24x24xf32>, vector<24x128xf32>, vector<24x128xf32> -> vector<24x128xf32>
    %15 = math.tanh %14 : vector<24x128xf32>
    %c3 = arith.constant 3 : index
    %c0_13 = arith.constant 0 : index
    %c0_14 = arith.constant 0 : index
    %16 = vector.load %arg3[%c3, %c0_13, %c0_14] : memref<5x24x24xf32, #tpu.memory_space<vmem>>, vector<1x24x24xf32>
    %17 = vector.shape_cast %16 : vector<1x24x24xf32> to vector<24x24xf32>
    %cst_15 = arith.constant dense<0.000000e+00> : vector<24x128xf32>
    %18 = tpu.matmul %17, %15, %cst_15 {dimension_numbers = #tpu.dot_dimension_numbers<[1], [0], [0], [1], [0, 0, 1, 1], [], []>} : vector<24x24xf32>, vector<24x128xf32>, vector<24x128xf32> -> vector<24x128xf32>
    %19 = math.tanh %18 : vector<24x128xf32>
    %c4 = arith.constant 4 : index
    %c0_16 = arith.constant 0 : index
    %c0_17 = arith.constant 0 : index
    %20 = vector.load %arg3[%c4, %c0_16, %c0_17] : memref<5x24x24xf32, #tpu.memory_space<vmem>>, vector<1x24x24xf32>
    %21 = vector.shape_cast %20 : vector<1x24x24xf32> to vector<24x24xf32>
    %cst_18 = arith.constant dense<0.000000e+00> : vector<24x128xf32>
    %22 = tpu.matmul %21, %19, %cst_18 {dimension_numbers = #tpu.dot_dimension_numbers<[1], [0], [0], [1], [0, 0, 1, 1], [], []>} : vector<24x24xf32>, vector<24x128xf32>, vector<24x128xf32> -> vector<24x128xf32>
    %23 = vector.extract_strided_slice %22 {offsets = [0, 0], sizes = [1, 128], strides = [1, 1]} : vector<24x128xf32> to vector<1x128xf32>
    %c0_19 = arith.constant 0 : index
    %c0_20 = arith.constant 0 : index
    %24 = vector.load %arg4[%c0_19, %c0_20] : memref<1x128xf32, #tpu.memory_space<vmem>>, vector<1x128xf32>
    tpu.vector_store %arg4[%c0_19, %c0_20], %23 {strides = array<i32>} : memref<1x128xf32, #tpu.memory_space<vmem>>, vector<1x128xf32>,
    return
  }
  func.func @transform_0(%arg0: i32) -> (i32, i32) {
    %c0_i32 = arith.constant 0 : i32
    %c0_i32_0 = arith.constant 0 : i32
    return %c0_i32, %arg0 : i32, i32
  }
  func.func @transform_1(%arg0: i32) -> (i32, i32) {
    %c0_i32 = arith.constant 0 : i32
    %c0_i32_0 = arith.constant 0 : i32
    %c0_i32_1 = arith.constant 0 : i32
    return %c0_i32, %c0_i32_0 : i32, i32
  }
  func.func @transform_2(%arg0: i32) -> (i32, i32, i32) {
    %c0_i32 = arith.constant 0 : i32
    %c0_i32_0 = arith.constant 0 : i32
    %c0_i32_1 = arith.constant 0 : i32
    %c0_i32_2 = arith.constant 0 : i32
    return %c0_i32, %c0_i32_0, %c0_i32_1 : i32, i32, i32
  }
  func.func @transform_3(%arg0: i32) -> (i32, i32) {
    %c0_i32 = arith.constant 0 : i32
    %c0_i32_0 = arith.constant 0 : i32
    return %c0_i32, %arg0 : i32, i32
  }
}

</mosaic_0001>

<llo_original>
// kernel: tpu_custom_call.1
$region0: #{tpu_custom_call.1}
  #allocation0 [shape = 'u32[]', space=smem, size = 0x4, offset = 0x4, fixed_abs, tag = 'smem constant byte address 0x4 - core index']
  #allocation1 [shape = 'u32[72,128]{1,0:T(1,128)}', space=vmem, size = 0x9000, scoped, tag = 'internal scratch']
  %s0 = inlined_call_operand.vmem [shape: f32[8,128], index: 0, kind: input, shape index: {}]
  %s1 = inlined_call_operand.vmem [shape: f32[24,8], index: 1, kind: input, shape index: {}]
  %s2 = inlined_call_operand.hbm [shape: f32[5,24,24], index: 2, kind: input, shape index: {}]
  %s3 = inlined_call_operand.hbm [shape: f32[1,128], index: 3, kind: output, shape index: {}]
  %s4 = sld [smem:[#allocation0]]
  $region26: #{tpu_custom_call.1} parent=0
    _
  %s6 = ssub.s32 1, %s4
  %s7 = scalar_select 0, %s6, %s4
  $region1: #{tpu_custom_call.1} parent=0
    #allocation2 [shape = 'u8[61440]{0}', space=vmem, size = 0xf000, scoped, tag = 'input window, operand 2, single buffered']
    #allocation3 [shape = 's32[1]{0}', space=sflag, size = 0x4, scoped, tag = 'scoped memory for tpu_custom_call.1']
    #allocation4 [shape = 's32[1]{0}', space=sflag, size = 0x4, scoped, tag = 'scoped memory for tpu_custom_call.1']
    #allocation5 [shape = 'u8[512]{0}', space=vmem, size = 0x400, scoped, tag = 'output window, operand 0, single buffered']
    %8 = vsyncpa [#allocation3], 0
    %9 = vsyncpa [#allocation4], 0
    // Predicated region
    $region2: #{tpu_custom_call.1} parent=1 // pred_check
      _
    $region3: #{tpu_custom_call.1} parent=1 // pred_check_branch
      %11 = sbr.rel (0) target = $region5
    $region4: #{tpu_custom_call.1} parent=1 // pred_region
      _
    $region5: #{tpu_custom_call.1} parent=1 // pred_fallthru
      _
    // Predicated region
    $region6: #{tpu_custom_call.1} parent=1 // pred_check
      _
    $region7: #{tpu_custom_call.1} parent=1 // pred_check_branch
      %13 = sbr.rel (0) target = $region9
    $region8: #{tpu_custom_call.1} parent=1 // pred_region
      _
    $region9: #{tpu_custom_call.1} parent=1 // pred_fallthru
      _
    // Predicated region
    $region10: #{tpu_custom_call.1} parent=1 // pred_check
      _
    $region11: #{tpu_custom_call.1} parent=1 // pred_check_branch
      %15 = sbr.rel (0) target = $region13
    $region12: #{tpu_custom_call.1} parent=1 // pred_region
      %17 = vsyncadd [#allocation3], 0
      %s18 = sshll.u32 %s2, 4
      %s19 = int_to_ptr.hbm [resolvable:$true] %s18
      %s20 = sshll.u32 [#allocation2], 4
      %s21 = int_to_ptr.vmem [resolvable:$true] %s20
      %26 = dma.hbm_to_vmem [thread:$0]  %s19, 1920, %s21, [#allocation3], 128, 128, 8
    $region13: #{tpu_custom_call.1} parent=1 // pred_fallthru
      _
    // Predicated region
    $region14: #{tpu_custom_call.1} parent=1 // pred_check
      _
    $region15: #{tpu_custom_call.1} parent=1 // pred_check_branch
      %28 = sbr.rel (0) target = $region17
    $region16: #{tpu_custom_call.1} parent=1 // pred_region
      %30 = dma.done [#allocation3], 1920
    $region17: #{tpu_custom_call.1} parent=1 // pred_fallthru
      _
    %v31 = vld [vmem:[%s0] sm:$0xff]
    %v32 = vld [vmem:[%s1] sm:$0xff]
    %v33 = vld [vmem:[%s1 + $0x8] sm:$0xff]
    %v34 = vld [vmem:[%s1 + $0x10] sm:$0xff]
    %vm35 = vcmask 64512
    %v37 = vsel %vm35, %v32, 0
    %v40 = vsel %vm35, %v33, 0
    %v43 = vsel %vm35, %v34, 0
    %45 = vmatpush.msra.mxu0 0.0
    %46 = vmatpush.msra.mxu0 0.0
    %47 = vmatpush.msra.mxu0 0.0
    %48 = vmatpush.msra.mxu0 0.0
    %49 = vmatpush.msra.mxu0 0.0
    %50 = vmatpush.msra.mxu0 0.0
    %51 = vmatpush.msra.mxu0 0.0
    %52 = vmatpush.msra.mxu0 0.0
    %53 = vmatpush.msra.mxu0 0.0
    %54 = vmatpush.msra.mxu0 0.0
    %55 = vmatpush.msra.mxu0 0.0
    %56 = vmatpush.msra.mxu0 0.0
    %57 = vmatpush.msra.mxu0 0.0
    %58 = vmatpush.msra.mxu0 0.0
    %59 = vmatpush.msra.mxu0 0.0
    %60 = vmatpush.msra.mxu0 %v31
    %61 = vmatmul.f32.gmra.mxu0 %v37
    %v62 = vpop.f32.mrf.mxu0
    %v63 = vadd.f32 0.0, %v62
    %64 = vmatmul.f32.gmra.mxu0 %v40
    %v65 = vpop.f32.mrf.mxu0
    %v66 = vadd.f32 0.0, %v65
    %67 = vmatmul.f32.gmra.mxu0 %v43
    %v68 = vpop.f32.mrf.mxu0
    %v69 = vadd.f32 0.0, %v68
    %70 = vdwg.mxu0
    %v71 = vtanh.pop %v63
    %v72 = vtanh.pop %v66
    %v73 = vtanh.pop %v69
    %v74 = vld [vmem:[#allocation2] sm:$0xff]
    %v75 = vld [vmem:[#allocation2 + $0x8] sm:$0xff]
    %v76 = vld [vmem:[#allocation2 + $0x10] sm:$0xff]
    %vm77 = vcmask 195584
    %v79 = vsel %vm77, %v74, 0
    %v82 = vsel %vm77, %v75, 0
    %v85 = vsel %vm77, %v76, 0
    %87 = vmatpush.msra.mxu0 0.0
    %88 = vmatpush.msra.mxu0 0.0
    %89 = vmatpush.msra.mxu0 0.0
    %90 = vmatpush.msra.mxu0 0.0
    %91 = vmatpush.msra.mxu0 0.0
    %92 = vmatpush.msra.mxu0 0.0
    %93 = vmatpush.msra.mxu0 0.0
    %94 = vmatpush.msra.mxu0 0.0
    %95 = vmatpush.msra.mxu0 0.0
    %96 = vmatpush.msra.mxu0 0.0
    %97 = vmatpush.msra.mxu0 0.0
    %98 = vmatpush.msra.mxu0 0.0
    %99 = vmatpush.msra.mxu0 0.0
    %100 = vmatpush.msra.mxu0 %v73
    %101 = vmatpush.msra.mxu0 %v72
    %102 = vmatpush.msra.mxu0 %v71
    %103 = vmatmul.f32.gmra.mxu0 %v79
    %v104 = vpop.f32.mrf.mxu0
    %v105 = vadd.f32 0.0, %v104
    %106 = vmatmul.f32.gmra.mxu0 %v82
    %v107 = vpop.f32.mrf.mxu0
    %v108 = vadd.f32 0.0, %v107
    %109 = vmatmul.f32.gmra.mxu0 %v85
    %v110 = vpop.f32.mrf.mxu0
    %v111 = vadd.f32 0.0, %v110
    %112 = vdwg.mxu0
    %v113 = vtanh.pop %v105
    %v114 = vtanh.pop %v108
    %v115 = vtanh.pop %v111
    %s116 = scalar_lea.vmem [#allocation2], 24
    %v117 = vld [vmem:[%s116] sm:$0xff]
    %v118 = vld [vmem:[%s116 + $0x8] sm:$0xff]
    %v119 = vld [vmem:[%s116 + $0x10] sm:$0xff]
    %v121 = vsel %vm77, %v117, 0
    %v124 = vsel %vm77, %v118, 0
    %v127 = vsel %vm77, %v119, 0
    %129 = vmatpush.msra.mxu0 0.0
    %130 = vmatpush.msra.mxu0 0.0
    %131 = vmatpush.msra.mxu0 0.0
    %132 = vmatpush.msra.mxu0 0.0
    %133 = vmatpush.msra.mxu0 0.0
    %134 = vmatpush.msra.mxu0 0.0
    %135 = vmatpush.msra.mxu0 0.0
    %136 = vmatpush.msra.mxu0 0.0
    %137 = vmatpush.msra.mxu0 0.0
    %138 = vmatpush.msra.mxu0 0.0
    %139 = vmatpush.msra.mxu0 0.0
    %140 = vmatpush.msra.mxu0 0.0
    %141 = vmatpush.msra.mxu0 0.0
    %142 = vmatpush.msra.mxu0 %v115
    %143 = vmatpush.msra.mxu0 %v114
    %144 = vmatpush.msra.mxu0 %v113
    %145 = vmatmul.f32.gmra.mxu0 %v121
    %v146 = vpop.f32.mrf.mxu0
    %v147 = vadd.f32 0.0, %v146
    %148 = vmatmul.f32.gmra.mxu0 %v124
    %v149 = vpop.f32.mrf.mxu0
    %v150 = vadd.f32 0.0, %v149
    %151 = vmatmul.f32.gmra.mxu0 %v127
    %v152 = vpop.f32.mrf.mxu0
    %v153 = vadd.f32 0.0, %v152
    %154 = vdwg.mxu0
    %v155 = vtanh.pop %v147
    %v156 = vtanh.pop %v150
    %v157 = vtanh.pop %v153
    %s158 = scalar_lea.vmem [#allocation2], 48
    %v159 = vld [vmem:[%s158] sm:$0xff]
    %v160 = vld [vmem:[%s158 + $0x8] sm:$0xff]
    %v161 = vld [vmem:[%s158 + $0x10] sm:$0xff]
    %v163 = vsel %vm77, %v159, 0
    %v166 = vsel %vm77, %v160, 0
    %v169 = vsel %vm77, %v161, 0
    %171 = vmatpush.msra.mxu0 0.0
    %172 = vmatpush.msra.mxu0 0.0
    %173 = vmatpush.msra.mxu0 0.0
    %174 = vmatpush.msra.mxu0 0.0
    %175 = vmatpush.msra.mxu0 0.0
    %176 = vmatpush.msra.mxu0 0.0
    %177 = vmatpush.msra.mxu0 0.0
    %178 = vmatpush.msra.mxu0 0.0
    %179 = vmatpush.msra.mxu0 0.0
    %180 = vmatpush.msra.mxu0 0.0
    %181 = vmatpush.msra.mxu0 0.0
    %182 = vmatpush.msra.mxu0 0.0
    %183 = vmatpush.msra.mxu0 0.0
    %184 = vmatpush.msra.mxu0 %v157
    %185 = vmatpush.msra.mxu0 %v156
    %186 = vmatpush.msra.mxu0 %v155
    %187 = vmatmul.f32.gmra.mxu0 %v163
    %v188 = vpop.f32.mrf.mxu0
    %v189 = vadd.f32 0.0, %v188
    %190 = vmatmul.f32.gmra.mxu0 %v166
    %v191 = vpop.f32.mrf.mxu0
    %v192 = vadd.f32 0.0, %v191
    %193 = vmatmul.f32.gmra.mxu0 %v169
    %v194 = vpop.f32.mrf.mxu0
    %v195 = vadd.f32 0.0, %v194
    %196 = vdwg.mxu0
    %v197 = vtanh.pop %v189
    %v198 = vtanh.pop %v192
    %v199 = vtanh.pop %v195
    %s200 = scalar_lea.vmem [#allocation2], 72
    %v201 = vld [vmem:[%s200] sm:$0xff]
    %v202 = vld [vmem:[%s200 + $0x8] sm:$0xff]
    %v203 = vld [vmem:[%s200 + $0x10] sm:$0xff]
    %v205 = vsel %vm77, %v201, 0
    %v208 = vsel %vm77, %v202, 0
    %v211 = vsel %vm77, %v203, 0
    %213 = vmatpush.msra.mxu0 0.0
    %214 = vmatpush.msra.mxu0 0.0
    %215 = vmatpush.msra.mxu0 0.0
    %216 = vmatpush.msra.mxu0 0.0
    %217 = vmatpush.msra.mxu0 0.0
    %218 = vmatpush.msra.mxu0 0.0
    %219 = vmatpush.msra.mxu0 0.0
    %220 = vmatpush.msra.mxu0 0.0
    %221 = vmatpush.msra.mxu0 0.0
    %222 = vmatpush.msra.mxu0 0.0
    %223 = vmatpush.msra.mxu0 0.0
    %224 = vmatpush.msra.mxu0 0.0
    %225 = vmatpush.msra.mxu0 0.0
    %226 = vmatpush.msra.mxu0 %v199
    %227 = vmatpush.msra.mxu0 %v198
    %228 = vmatpush.msra.mxu0 %v197
    %229 = vmatmul.f32.gmra.mxu0 %v205
    %v230 = vpop.f32.mrf.mxu0
    %v231 = vadd.f32 0.0, %v230
    %232 = vmatmul.f32.gmra.mxu0 %v208
    %v233 = vpop.f32.mrf.mxu0
    %v234 = vadd.f32 0.0, %v233
    %235 = vmatmul.f32.gmra.mxu0 %v211
    %v236 = vpop.f32.mrf.mxu0
    %v237 = vadd.f32 0.0, %v236
    %238 = vdwg.mxu0
    %v239 = vtanh.pop %v231
    %v240 = vtanh.pop %v234
    %v241 = vtanh.pop %v237
    %s242 = scalar_lea.vmem [#allocation2], 96
    %v243 = vld [vmem:[%s242] sm:$0xff]
    %v244 = vld [vmem:[%s242 + $0x8] sm:$0xff]
    %v245 = vld [vmem:[%s242 + $0x10] sm:$0xff]
    %v247 = vsel %vm77, %v243, 0
    %v250 = vsel %vm77, %v244, 0
    %v253 = vsel %vm77, %v245, 0
    %255 = vmatpush.msra.mxu0 0.0
    %256 = vmatpush.msra.mxu0 0.0
    %257 = vmatpush.msra.mxu0 0.0
    %258 = vmatpush.msra.mxu0 0.0
    %259 = vmatpush.msra.mxu0 0.0
    %260 = vmatpush.msra.mxu0 0.0
    %261 = vmatpush.msra.mxu0 0.0
    %262 = vmatpush.msra.mxu0 0.0
    %263 = vmatpush.msra.mxu0 0.0
    %264 = vmatpush.msra.mxu0 0.0
    %265 = vmatpush.msra.mxu0 0.0
    %266 = vmatpush.msra.mxu0 0.0
    %267 = vmatpush.msra.mxu0 0.0
    %268 = vmatpush.msra.mxu0 %v241
    %269 = vmatpush.msra.mxu0 %v240
    %270 = vmatpush.msra.mxu0 %v239
    %271 = vmatmul.f32.gmra.mxu0 %v247
    %v272 = vpop.f32.mrf.mxu0
    %v273 = vadd.f32 0.0, %v272
    %274 = vmatmul.f32.gmra.mxu0 %v250
    %v275 = vpop.f32.mrf.mxu0
    %276 = vmatmul.f32.gmra.mxu0 %v253
    %v277 = vpop.f32.mrf.mxu0
    %278 = vdwg.mxu0
    %279 = vst [vmem:[#allocation5] sm:$0x1] %v273
    // Predicated region
    $region18: #{tpu_custom_call.1} parent=1 // pred_check
      _
    $region19: #{tpu_custom_call.1} parent=1 // pred_check_branch
      %281 = sbr.rel (0) target = $region21
    $region20: #{tpu_custom_call.1} parent=1 // pred_region
      %283 = vsyncadd [#allocation4], 0
      %s285 = sshll.u32 [#allocation5], 4
      %s286 = int_to_ptr.vmem [resolvable:$true] %s285
      %s287 = sshll.u32 %s3, 4
      %s288 = int_to_ptr.hbm [resolvable:$true] %s287
      %290 = dma.vmem_to_hbm [thread:$0]  %s286, 16, %s288, [#allocation4]
    $region21: #{tpu_custom_call.1} parent=1 // pred_fallthru
      _
    // Predicated region
    $region22: #{tpu_custom_call.1} parent=1 // pred_check
      _
    $region23: #{tpu_custom_call.1} parent=1 // pred_check_branch
      %292 = sbr.rel (0) target = $region25
    $region24: #{tpu_custom_call.1} parent=1 // pred_region
      %294 = dma.done [#allocation4], 16
    $region25: #{tpu_custom_call.1} parent=1 // pred_fallthru
      _
    %295 = vsyncpa [#allocation3], 1
    %296 = vsyncpa [#allocation4], 1

</llo_original>
